<compile_context>
chip_gen: v6e
topology: v6e:2x2x1
jax: 0.10.0
libtpu: 0.0.40
codegen_flags: <defaults>
</compile_context>

<pallas_src>
from functools import partial

import jax
import jax.numpy as jnp
from jax.experimental import pallas as pl
from jax.experimental.pallas import tpu as pltpu

LANE = 128
TARGET_TILE_BYTES = 2 * 1024 * 1024  # per-buffer tile size (~2 MiB)


# ---------------------------------------------------------------------------
# Kernel: relu(x) + per-lane partial sums of |x| for this row tile
# ---------------------------------------------------------------------------
def _relu_absmean_kernel(x_ref, act_ref, psum_ref, *, total_rows, mask_rows):
    x = x_ref[...]                                        # (tm, 128), input dtype
    act_ref[...] = jnp.maximum(x, 0).astype(act_ref.dtype)  # relu, lane-dense store

    ax = jnp.abs(x.astype(jnp.float32))                   # f32 accumulation
    if mask_rows:
        # Last tile may extend past the true row count; zero the garbage rows.
        tm = x_ref.shape[0]
        row = jax.lax.broadcasted_iota(jnp.int32, ax.shape, 0) + pl.program_id(0) * tm
        ax = jnp.where(row < total_rows, ax, 0.0)

    # Per-lane (sublane-reduced) partial sums; cross-lane / cross-tile reduce is
    # a tiny host-side jnp.sum over a lane-dense (1, grid*128) output.
    psum_ref[...] = jnp.sum(ax, axis=0, keepdims=True)


# ---------------------------------------------------------------------------
# Tiling policy
# ---------------------------------------------------------------------------
def _round_up(x, mult):
    return -(-x // mult) * mult


def _choose_tile_rows(m, itemsize):
    """Largest useful row tile; keeps grid >= 2 for v7x megacore when possible."""
    row_align = max(8, 32 // itemsize)            # f32 -> 8, bf16 -> 16
    target = max(row_align, TARGET_TILE_BYTES // (LANE * itemsize))
    if m <= target:
        if m >= 4 * row_align:
            # Split into two blocks so the "parallel" axis can shard across
            # both TensorCores on v7x.
            return _round_up(-(-m // 2), row_align)
        return m                                   # single full-extent block
    return target


# ---------------------------------------------------------------------------
# Wrapper: layout plumbing + pallas_call
# ---------------------------------------------------------------------------
def custom_relu_pallas(x, *, donate_preact=False):
    """Returns (relu(x), mean(|x|)) computed in a single fused Pallas HBM pass.

    donate_preact: if the caller no longer needs `x`, alias it to the relu
    output (halves HBM footprint; only legal when the buffer is donated).
    """
    orig_shape = x.shape
    orig_dtype = x.dtype
    n = x.size
    if n == 0:
        return x, jnp.float32(0.0)

    flat = x.reshape(-1)
    rem = n % LANE
    if rem:
        # TODO(synk): non-128-multiple sizes pay one extra pad + slice HBM round
        # trip; NN pre-activations are essentially always 128-aligned so the
        # common path below is zero-copy.
        flat = jnp.pad(flat, (0, LANE - rem))
    m = flat.size // LANE
    x2d = flat.reshape(m, LANE)

    itemsize = jnp.dtype(orig_dtype).itemsize
    tm = _choose_tile_rows(m, itemsize)
    grid_m = pl.cdiv(m, tm)
    mask_rows = (m % tm) != 0

    kernel = partial(_relu_absmean_kernel, total_rows=m, mask_rows=mask_rows)

    act2d, psum = pl.pallas_call(
        kernel,
        out_shape=(
            jax.ShapeDtypeStruct((m, LANE), orig_dtype),             # relu(x)
            jax.ShapeDtypeStruct((1, grid_m * LANE), jnp.float32),   # per-tile lane sums
        ),
        grid=(grid_m,),
        in_specs=[pl.BlockSpec((tm, LANE), lambda i: (i, 0))],
        out_specs=(
            pl.BlockSpec((tm, LANE), lambda i: (i, 0)),
            pl.BlockSpec((1, LANE), lambda i: (0, i)),
        ),
        compiler_params=pltpu.CompilerParams(
            dimension_semantics=("parallel",),        # independent tiles -> 2 TCs on v7x
            vmem_limit_bytes=32 * 1024 * 1024,        # headroom, safe on v5e/v6e/v7x
        ),
        input_output_aliases=({0: 0} if donate_preact else {}),
    )(x2d)

    if rem:
        act = act2d.reshape(-1)[:n].reshape(orig_shape)
    else:
        act = act2d.reshape(orig_shape)               # free metadata reshape
    avg_abs = jnp.sum(psum) / jnp.float32(n)          # padded zeros are neutral
    return act, avg_abs


# ---------------------------------------------------------------------------
# Module-like wrapper mirroring CustomReLU
# ---------------------------------------------------------------------------
class CustomReLU:
    def __init__(self):
        self.collect_preact = True
        # Stores DEVICE scalars to avoid a per-call host sync; call float() /
        # np.asarray() on them only when the values are actually needed.
        self.avg_preacts = []

    def forward(self, preact):
        act, avg_abs = custom_relu_pallas(preact)
        if self.collect_preact:
            self.avg_preacts.append(avg_abs)
        return act

    __call__ = forward


# ---------------------------------------------------------------------------
# Self-test
# ---------------------------------------------------------------------------
if __name__ == "__main__":
    key = jax.random.PRNGKey(0)

    cases = [
        ((2, 4, 16, 16), jnp.float32),    # 2048 elems = 16 rows, aligned, grid=2
        ((40, 3, 128), jnp.float32),      # 15360 elems = 120 rows, partial last tile (mask path)
        ((2, 8, 32, 32), jnp.bfloat16),   # 16384 elems, bf16 end-to-end
        ((3, 5, 7, 9), jnp.float32),      # 945 elems, ragged fallback path
    ]

    module = CustomReLU()
    for idx, (shape, dtype) in enumerate(cases):
        x = jax.random.normal(jax.random.fold_in(key, idx), shape, jnp.float32).astype(dtype)

        act = module(x)
        act = jax.block_until_ready(act)

        xf = x.astype(jnp.float32)
        ref_act = jnp.maximum(xf, 0.0).astype(dtype)
        ref_avg = float(jnp.mean(jnp.abs(xf)))

        assert act.shape == x.shape, (act.shape, x.shape)
        assert act.dtype == x.dtype, (act.dtype, x.dtype)
        max_err = float(jnp.max(jnp.abs(act.astype(jnp.float32) - ref_act.astype(jnp.float32))))
        got_avg = float(module.avg_preacts[-1])
        avg_err = abs(got_avg - ref_avg) / max(abs(ref_avg), 1e-12)
        assert max_err == 0.0, f"{shape} {dtype}: relu max abs error {max_err}"
        assert avg_err < 1e-4, f"{shape} {dtype}: avg|preact| rel error {avg_err}"

    assert len(module.avg_preacts) == len(cases)
    print("KERNEL_OK")
</pallas_src>

<mosaic_0001>
module attributes {stable_mosaic.version = 11 : i64} {
  func.func @_relu_absmean_kernel(%arg0: i32, %arg1: memref<16x128xf32, #tpu.memory_space<vmem>>, %arg2: memref<16x128xf32, #tpu.memory_space<vmem>>, %arg3: memref<1x128xf32, #tpu.memory_space<vmem>>) attributes {dimension_semantics = [#tpu.dimension_semantics<parallel>], iteration_bounds = array<i64: 1>, scalar_prefetch = 0 : i64, scratch_operands = 0 : i64, tpu.core_type = #tpu.core_type<tc>, window_params = [{transform_indices = @transform_0, window_bounds = array<i64: 16, 128>}, {transform_indices = @transform_1, window_bounds = array<i64: 16, 128>}, {transform_indices = @transform_2, window_bounds = array<i64: 1, 128>}]} {
    %c0 = arith.constant 0 : index
    %c0_0 = arith.constant 0 : index
    %0 = vector.load %arg1[%c0, %c0_0] : memref<16x128xf32, #tpu.memory_space<vmem>>, vector<16x128xf32>
    %cst = arith.constant 0.000000e+00 : f32
    %1 = vector.broadcast %cst : f32 to vector<16x128xf32>
    %2 = arith.maximumf %0, %1 : vector<16x128xf32>
    %c0_1 = arith.constant 0 : index
    %c0_2 = arith.constant 0 : index
    %3 = vector.load %arg2[%c0_1, %c0_2] : memref<16x128xf32, #tpu.memory_space<vmem>>, vector<16x128xf32>
    tpu.vector_store %arg2[%c0_1, %c0_2], %2 {strides = array<i32>} : memref<16x128xf32, #tpu.memory_space<vmem>>, vector<16x128xf32>,
    %4 = math.absf %0 : vector<16x128xf32>
    %cst_3 = arith.constant dense<0.000000e+00> : vector<128xf32>
    %5 = vector.multi_reduction <add>, %4, %cst_3 [0] : vector<16x128xf32> to vector<128xf32>
    %6 = vector.shape_cast %5 : vector<128xf32> to vector<1x128xf32>
    %c0_4 = arith.constant 0 : index
    %c0_5 = arith.constant 0 : index
    %7 = vector.load %arg3[%c0_4, %c0_5] : memref<1x128xf32, #tpu.memory_space<vmem>>, vector<1x128xf32>
    tpu.vector_store %arg3[%c0_4, %c0_5], %6 {strides = array<i32>} : memref<1x128xf32, #tpu.memory_space<vmem>>, vector<1x128xf32>,
    return
  }
  func.func @transform_0(%arg0: i32) -> (i32, i32) {
    %c0_i32 = arith.constant 0 : i32
    %c0_i32_0 = arith.constant 0 : i32
    return %arg0, %c0_i32 : i32, i32
  }
  func.func @transform_1(%arg0: i32) -> (i32, i32) {
    %c0_i32 = arith.constant 0 : i32
    %c0_i32_0 = arith.constant 0 : i32
    return %arg0, %c0_i32 : i32, i32
  }
  func.func @transform_2(%arg0: i32) -> (i32, i32) {
    %c0_i32 = arith.constant 0 : i32
    %c0_i32_0 = arith.constant 0 : i32
    return %c0_i32, %arg0 : i32, i32
  }
}

</mosaic_0001>

<llo_original>
// kernel: tpu_custom_call.1
$region0: #{tpu_custom_call.1}
  #allocation0 [shape = 'u32[]', space=smem, size = 0x4, offset = 0x4, fixed_abs, tag = 'smem constant byte address 0x4 - core index']
  #allocation1 [shape = 'u32[144,128]{1,0:T(1,128)}', space=vmem, size = 0x12000, scoped, tag = 'internal scratch']
  %s0 = inlined_call_operand.hbm [shape: f32[16,128], index: 0, kind: input, shape index: {}]
  %s1 = inlined_call_operand.hbm [shape: f32[16,128], index: 1, kind: output, shape index: {0}]
  %s2 = inlined_call_operand.hbm [shape: f32[1,128], index: 2, kind: output, shape index: {1}]
  %3 = xla_tuple %s1, %s2
  %s4 = sld [smem:[#allocation0]]
  $region26: #{tpu_custom_call.1} parent=0
    _
  %s6 = ssub.s32 1, %s4
  %s7 = scalar_select 0, %s6, %s4
  $region1: #{tpu_custom_call.1} parent=0
    #allocation2 [shape = 'u8[8192]{0}', space=vmem, size = 0x2000, scoped, tag = 'input window, operand 0, single buffered']
    #allocation3 [shape = 's32[1]{0}', space=sflag, size = 0x4, scoped, tag = 'scoped memory for tpu_custom_call.1']
    #allocation4 [shape = 's32[1]{0}', space=sflag, size = 0x4, scoped, tag = 'scoped memory for tpu_custom_call.1']
    #allocation5 [shape = 'u8[8192]{0}', space=vmem, size = 0x2000, scoped, tag = 'output window, operand 0, single buffered']
    #allocation6 [shape = 'u8[512]{0}', space=vmem, size = 0x400, scoped, tag = 'output window, operand 1, single buffered']
    #allocation7 [shape = 's32[1]{0}', space=sflag, size = 0x4, scoped, tag = 'scoped memory for tpu_custom_call.1']
    %8 = vsyncpa [#allocation3], 0
    %9 = vsyncpa [#allocation4], 0
    %10 = vsyncpa [#allocation7], 0
    // Predicated region
    $region2: #{tpu_custom_call.1} parent=1 // pred_check
      _
    $region3: #{tpu_custom_call.1} parent=1 // pred_check_branch
      %12 = sbr.rel (0) target = $region5
    $region4: #{tpu_custom_call.1} parent=1 // pred_region
      %s14 = ssub.s32 256, 256
      %15 = vsyncadd [#allocation3], %s14
      %s16 = sshll.u32 [#allocation2], 4
      %s17 = int_to_ptr.vmem [resolvable:$true] %s16
      %22 = dma.hbm_to_vmem [thread:$0]  %s0, 256, %s17, [#allocation3], 128, 128, 8
    $region5: #{tpu_custom_call.1} parent=1 // pred_fallthru
      _
    // Predicated region
    $region6: #{tpu_custom_call.1} parent=1 // pred_check
      _
    $region7: #{tpu_custom_call.1} parent=1 // pred_check_branch
      %24 = sbr.rel (0) target = $region9
    $region8: #{tpu_custom_call.1} parent=1 // pred_region
      %25 = dma.done [#allocation3], 256
    $region9: #{tpu_custom_call.1} parent=1 // pred_fallthru
      _
    %v26 = vld [vmem:[#allocation2] sm:$0xff]
    %v27 = vld [vmem:[#allocation2 + $0x8] sm:$0xff]
    %v28 = vmax.f32 %v26, 0.0
    %v29 = vmax.f32 %v27, 0.0
    %30 = vst [vmem:[#allocation5] sm:$0xff] %v28
    %31 = vst [vmem:[#allocation5 + $0x8] sm:$0xff] %v29
    %v32 = vand.u32 2147483647, %v26
    %v33 = vand.u32 2147483647, %v27
    %v34 = vadd.f32 %v32, %v33
    %v35 = vrot.slane %v34, 4
    %v36 = vadd.f32 %v34, %v35
    %v37 = vrot.slane %v36, 2
    %v38 = vadd.f32 %v36, %v37
    %v39 = vrot.slane %v38, 1
    %v40 = vadd.f32 %v38, %v39
    %41 = vst [vmem:[#allocation6] sm:$0x1] %v40
    // Predicated region
    $region10: #{tpu_custom_call.1} parent=1 // pred_check
      _
    $region11: #{tpu_custom_call.1} parent=1 // pred_check_branch
      %43 = sbr.rel (0) target = $region13
    $region12: #{tpu_custom_call.1} parent=1 // pred_region
      %s45 = ssub.s32 256, 256
      %46 = vsyncadd [#allocation4], %s45
      %s47 = sshll.u32 [#allocation5], 4
      %s48 = int_to_ptr.vmem [resolvable:$true] %s47
      %53 = dma.vmem_to_hbm [thread:$0]  %s48, 256, %s1, [#allocation4], 128, 128, 8
    $region13: #{tpu_custom_call.1} parent=1 // pred_fallthru
      _
    // Predicated region
    $region14: #{tpu_custom_call.1} parent=1 // pred_check
      _
    $region15: #{tpu_custom_call.1} parent=1 // pred_check_branch
      %55 = sbr.rel (0) target = $region17
    $region16: #{tpu_custom_call.1} parent=1 // pred_region
      %s57 = ssub.s32 16, 16
      %58 = vsyncadd [#allocation7], %s57
      %s60 = sshll.u32 [#allocation6], 4
      %s61 = int_to_ptr.vmem [resolvable:$true] %s60
      %63 = dma.vmem_to_hbm [thread:$0]  %s61, 16, %s2, [#allocation7]
    $region17: #{tpu_custom_call.1} parent=1 // pred_fallthru
      _
    // Predicated region
    $region18: #{tpu_custom_call.1} parent=1 // pred_check
      _
    $region19: #{tpu_custom_call.1} parent=1 // pred_check_branch
      %65 = sbr.rel (0) target = $region21
    $region20: #{tpu_custom_call.1} parent=1 // pred_region
      %66 = dma.done [#allocation4], 256
    $region21: #{tpu_custom_call.1} parent=1 // pred_fallthru
      _
    // Predicated region
    $region22: #{tpu_custom_call.1} parent=1 // pred_check
      _
    $region23: #{tpu_custom_call.1} parent=1 // pred_check_branch
      %68 = sbr.rel (0) target = $region25
    $region24: #{tpu_custom_call.1} parent=1 // pred_region
      %69 = dma.done [#allocation7], 16
    $region25: #{tpu_custom_call.1} parent=1 // pred_fallthru
      _
    %70 = vsyncpa [#allocation3], 1
    %71 = vsyncpa [#allocation4], 1
    %72 = vsyncpa [#allocation7], 1

</llo_original>
